<compile_context>
chip_gen: v5e
topology: v5e:2x2
jax: 0.10.0
libtpu: 0.0.40
codegen_flags: <defaults>
</compile_context>

<pallas_src>
import functools

import jax
import jax.numpy as jnp
from jax.experimental import pallas as pl
from jax.experimental.pallas import tpu as pltpu


def _regression_kernel(B, L, E, Vp, Hp,
                       tok_ref, emb_ref, w1_ref, aux_ref,
                       out_ref, x_ref):
    # tok_ref: (L*B, 1) int32  tokens, position-major (row = l*B + b)
    # emb_ref: (Vp, E)  f32    zero-padded embedding table
    # w1_ref:  (L*E, Hp) f32   zero-padded fc1 weight, flat torch row order
    # aux_ref: (3, Hp)  f32    row0 = b1 (padded), row1 = w2 (padded), row2[0] = b2
    # out_ref: (B, 1)   f32
    # x_ref:   (B, L*E) f32    scratch: flattened embeddings in torch (b, l*E+e) order

    # ---- Embedding gather fused in-kernel: one-hot (VPU) + one MXU matmul -----
    # (exact in f32: rows of the table are reproduced bit-exactly)
    vocab_ids = jax.lax.broadcasted_iota(jnp.int32, (L * B, Vp), 1)
    onehot = (tok_ref[...] == vocab_ids).astype(jnp.float32)            # (L*B, Vp)
    # NOTE: out-of-range token ids (>= V) yield an all-zero row (zero embedding),
    # whereas torch.nn.Embedding would raise; inputs are assumed valid.
    gathered = jnp.dot(onehot, emb_ref[...],
                       preferred_element_type=jnp.float32)              # (L*B, E)

    # ---- One-time sublane->lane relayout into the lane-dense (B, L*E) slab ----
    # 16 contiguous (B, E) chunks stored at static lane offsets; replaces the
    # previous 16 tiny MXU matmuls + serial f32 add chain.
    for l in range(L):
        x_ref[:, l * E:(l + 1) * E] = gathered[l * B:(l + 1) * B, :]

    # ---- fc1: single (B, L*E) @ (L*E, Hp) MXU matmul, f32 accumulation --------
    hidden = jnp.dot(x_ref[...], w1_ref[...],
                     preferred_element_type=jnp.float32) + aux_ref[0:1, :]

    # ---- fc2 (N=1): VPU multiply + lane reduction instead of a degenerate matmul
    logits = (jnp.sum(hidden * aux_ref[1:2, :], axis=-1, keepdims=True)
              + aux_ref[2:3, 0:1])
    out_ref[...] = jax.nn.sigmoid(logits) * 9.0 + 1.0


def _round_up(x, m):
    return ((x + m - 1) // m) * m


def prepare_params(emb_table, w1, b1, w2, b2, max_length):
    """One-time weight preparation (padding + packing). Call once, reuse forever.

    emb_table: (V, E) f32, w1: (L*E, 200) (transpose of torch layout),
    b1: (200,), w2: (200, 1), b2: (1,).
    Returns (emb_pad (Vp,E), w1_pad (L*E,Hp), aux (3,Hp)).
    """
    V, E = emb_table.shape
    H = w1.shape[1]
    L = max_length
    assert w1.shape[0] == L * E
    Vp = _round_up(V, 128)   # 251 -> 256: lane-dense one-hot
    Hp = _round_up(H, 128)   # 200 -> 256: lane-dense hidden

    emb_pad = jnp.zeros((Vp, E), jnp.float32).at[:V, :].set(
        emb_table.astype(jnp.float32))
    w1_pad = jnp.zeros((L * E, Hp), jnp.float32).at[:, :H].set(
        w1.astype(jnp.float32))
    aux = (jnp.zeros((3, Hp), jnp.float32)
           .at[0, :H].set(b1.astype(jnp.float32))
           .at[1, :H].set(w2[:, 0].astype(jnp.float32))
           .at[2, 0].set(b2.reshape(()).astype(jnp.float32)))
    # Padded Hp lanes are zero in w1/b1 and killed again by the zero-padded w2 row.
    return emb_pad, w1_pad, aux


@jax.jit
def regression_forward(tokens, emb_pad, w1_pad, aux):
    """tokens: (B, L) int32; prepared params from prepare_params(). Returns (B, 1) f32."""
    B, L = tokens.shape
    Vp, E = emb_pad.shape
    LE, Hp = w1_pad.shape

    # Position-major token column (row = l*B + b): per-position rows are contiguous
    # sublane groups inside the kernel.  512 bytes; negligible per-call cost.
    tokens_lb = tokens.astype(jnp.int32).T.reshape(L * B, 1)

    kernel = functools.partial(_regression_kernel, B, L, E, Vp, Hp)
    out = pl.pallas_call(
        kernel,
        out_shape=jax.ShapeDtypeStruct((B, 1), jnp.float32),
        in_specs=[
            pl.BlockSpec((L * B, 1), lambda: (0, 0)),
            pl.BlockSpec((Vp, E), lambda: (0, 0)),
            pl.BlockSpec((LE, Hp), lambda: (0, 0)),
            pl.BlockSpec((3, Hp), lambda: (0, 0)),
        ],
        out_specs=pl.BlockSpec((B, 1), lambda: (0, 0)),
        scratch_shapes=[pltpu.VMEM((B, LE), jnp.float32)],
        compiler_params=pltpu.CompilerParams(vmem_limit_bytes=4 << 20),
    )(tokens_lb, emb_pad, w1_pad, aux)
    return out


def init_params(key, character_size, embedding_dim, max_length):
    """Deterministic parameter init mimicking PyTorch defaults (shapes are what matters)."""
    k_emb, k_w1, k_b1, k_w2, k_b2 = jax.random.split(key, 5)
    in1 = max_length * embedding_dim
    emb_table = jax.random.normal(k_emb, (character_size, embedding_dim), jnp.float32)
    bound1 = 1.0 / jnp.sqrt(jnp.float32(in1))
    w1 = jax.random.uniform(k_w1, (in1, 200), jnp.float32, -bound1, bound1)
    b1 = jax.random.uniform(k_b1, (200,), jnp.float32, -bound1, bound1)
    bound2 = 1.0 / jnp.sqrt(jnp.float32(200.0))
    w2 = jax.random.uniform(k_w2, (200, 1), jnp.float32, -bound2, bound2)
    b2 = jax.random.uniform(k_b2, (1,), jnp.float32, -bound2, bound2)
    return emb_table, w1, b1, w2, b2


if __name__ == "__main__":
    # Shapes consistent with the module: batch=8, max_length=16, embedding_dim=32.
    B, L, E = 8, 16, 32
    CHARACTER_SIZE = 251

    key = jax.random.PRNGKey(0)
    k_params, k_tokens = jax.random.split(key)
    emb_table, w1, b1, w2, b2 = init_params(k_params, CHARACTER_SIZE, E, L)
    tokens = jax.random.randint(k_tokens, (B, L), 0, CHARACTER_SIZE, dtype=jnp.int32)

    # One-time prep, hoisted out of the per-call path (largest end-to-end win at B=8).
    emb_pad, w1_pad, aux = jax.block_until_ready(
        prepare_params(emb_table, w1, b1, w2, b2, L))

    out = regression_forward(tokens, emb_pad, w1_pad, aux)
    out = jax.block_until_ready(out)
    assert out.shape == (B, 1)

    # Pure-f32 reference of the original module math (highest-precision matmuls).
    x32 = jnp.take(emb_table, tokens, axis=0).reshape(B, L * E)
    hidden_ref = jnp.dot(x32, w1, precision=jax.lax.Precision.HIGHEST) + b1
    ref32 = jax.nn.sigmoid(
        jnp.dot(hidden_ref, w2, precision=jax.lax.Precision.HIGHEST) + b2) * 9.0 + 1.0
    # Kernel is f32 end to end; tolerance only covers MXU f32-pass rounding.
    assert jnp.allclose(out, ref32, atol=2e-2, rtol=1e-3), (out, ref32)

    print("KERNEL_OK")
</pallas_src>

<mosaic_0001>
module attributes {stable_mosaic.version = 11 : i64} {
  func.func @_regression_kernel(%arg0: memref<128x1xi32, #tpu.memory_space<vmem>>, %arg1: memref<256x32xf32, #tpu.memory_space<vmem>>, %arg2: memref<512x256xf32, #tpu.memory_space<vmem>>, %arg3: memref<3x256xf32, #tpu.memory_space<vmem>>, %arg4: memref<8x1xf32, #tpu.memory_space<vmem>>, %arg5: memref<8x512xf32, #tpu.memory_space<vmem>>) attributes {dimension_semantics = [], scalar_prefetch = 0 : i64, scratch_operands = 1 : i64, tpu.core_type = #tpu.core_type<tc>} {
    %0 = tpu.iota {dimensions = array<i32: 1>} : vector<128x256xi32>
    %c0 = arith.constant 0 : index
    %c0_0 = arith.constant 0 : index
    %1 = vector.load %arg0[%c0, %c0_0] : memref<128x1xi32, #tpu.memory_space<vmem>>, vector<128x1xi32>
    %2 = vector.broadcast %1 : vector<128x1xi32> to vector<128x256xi32>
    %3 = arith.cmpi eq, %2, %0 : vector<128x256xi32>
    %4 = arith.extui %3 : vector<128x256xi1> to vector<128x256xi32>
    %5 = arith.sitofp %4 : vector<128x256xi32> to vector<128x256xf32>
    %c0_1 = arith.constant 0 : index
    %c0_2 = arith.constant 0 : index
    %6 = vector.load %arg1[%c0_1, %c0_2] : memref<256x32xf32, #tpu.memory_space<vmem>>, vector<256x32xf32>
    %cst = arith.constant dense<0.000000e+00> : vector<128x32xf32>
    %7 = tpu.matmul %5, %6, %cst {dimension_numbers = #tpu.dot_dimension_numbers<[1], [0], [0], [1], [0, 0, 1, 1], [], []>} : vector<128x256xf32>, vector<256x32xf32>, vector<128x32xf32> -> vector<128x32xf32>
    %8 = vector.extract_strided_slice %7 {offsets = [0, 0], sizes = [8, 32], strides = [1, 1]} : vector<128x32xf32> to vector<8x32xf32>
    %c0_3 = arith.constant 0 : index
    %c0_4 = arith.constant 0 : index
    %9 = vector.load %arg5[%c0_3, %c0_4] : memref<8x512xf32, #tpu.memory_space<vmem>>, vector<8x32xf32>
    tpu.vector_store %arg5[%c0_3, %c0_4], %8 {strides = array<i32>} : memref<8x512xf32, #tpu.memory_space<vmem>>, vector<8x32xf32>,
    %10 = vector.extract_strided_slice %7 {offsets = [8, 0], sizes = [8, 32], strides = [1, 1]} : vector<128x32xf32> to vector<8x32xf32>
    %c0_5 = arith.constant 0 : index
    %c32 = arith.constant 32 : index
    %11 = vector.load %arg5[%c0_5, %c32] : memref<8x512xf32, #tpu.memory_space<vmem>>, vector<8x32xf32>
    tpu.vector_store %arg5[%c0_5, %c32], %10 {strides = array<i32>} : memref<8x512xf32, #tpu.memory_space<vmem>>, vector<8x32xf32>,
    %12 = vector.extract_strided_slice %7 {offsets = [16, 0], sizes = [8, 32], strides = [1, 1]} : vector<128x32xf32> to vector<8x32xf32>
    %c0_6 = arith.constant 0 : index
    %c64 = arith.constant 64 : index
    %13 = vector.load %arg5[%c0_6, %c64] : memref<8x512xf32, #tpu.memory_space<vmem>>, vector<8x32xf32>
    tpu.vector_store %arg5[%c0_6, %c64], %12 {strides = array<i32>} : memref<8x512xf32, #tpu.memory_space<vmem>>, vector<8x32xf32>,
    %14 = vector.extract_strided_slice %7 {offsets = [24, 0], sizes = [8, 32], strides = [1, 1]} : vector<128x32xf32> to vector<8x32xf32>
    %c0_7 = arith.constant 0 : index
    %c96 = arith.constant 96 : index
    %15 = vector.load %arg5[%c0_7, %c96] : memref<8x512xf32, #tpu.memory_space<vmem>>, vector<8x32xf32>
    tpu.vector_store %arg5[%c0_7, %c96], %14 {strides = array<i32>} : memref<8x512xf32, #tpu.memory_space<vmem>>, vector<8x32xf32>,
    %16 = vector.extract_strided_slice %7 {offsets = [32, 0], sizes = [8, 32], strides = [1, 1]} : vector<128x32xf32> to vector<8x32xf32>
    %c0_8 = arith.constant 0 : index
    %c128 = arith.constant 128 : index
    %17 = vector.load %arg5[%c0_8, %c128] : memref<8x512xf32, #tpu.memory_space<vmem>>, vector<8x32xf32>
    tpu.vector_store %arg5[%c0_8, %c128], %16 {strides = array<i32>} : memref<8x512xf32, #tpu.memory_space<vmem>>, vector<8x32xf32>,
    %18 = vector.extract_strided_slice %7 {offsets = [40, 0], sizes = [8, 32], strides = [1, 1]} : vector<128x32xf32> to vector<8x32xf32>
    %c0_9 = arith.constant 0 : index
    %c160 = arith.constant 160 : index
    %19 = vector.load %arg5[%c0_9, %c160] : memref<8x512xf32, #tpu.memory_space<vmem>>, vector<8x32xf32>
    tpu.vector_store %arg5[%c0_9, %c160], %18 {strides = array<i32>} : memref<8x512xf32, #tpu.memory_space<vmem>>, vector<8x32xf32>,
    %20 = vector.extract_strided_slice %7 {offsets = [48, 0], sizes = [8, 32], strides = [1, 1]} : vector<128x32xf32> to vector<8x32xf32>
    %c0_10 = arith.constant 0 : index
    %c192 = arith.constant 192 : index
    %21 = vector.load %arg5[%c0_10, %c192] : memref<8x512xf32, #tpu.memory_space<vmem>>, vector<8x32xf32>
    tpu.vector_store %arg5[%c0_10, %c192], %20 {strides = array<i32>} : memref<8x512xf32, #tpu.memory_space<vmem>>, vector<8x32xf32>,
    %22 = vector.extract_strided_slice %7 {offsets = [56, 0], sizes = [8, 32], strides = [1, 1]} : vector<128x32xf32> to vector<8x32xf32>
    %c0_11 = arith.constant 0 : index
    %c224 = arith.constant 224 : index
    %23 = vector.load %arg5[%c0_11, %c224] : memref<8x512xf32, #tpu.memory_space<vmem>>, vector<8x32xf32>
    tpu.vector_store %arg5[%c0_11, %c224], %22 {strides = array<i32>} : memref<8x512xf32, #tpu.memory_space<vmem>>, vector<8x32xf32>,
    %24 = vector.extract_strided_slice %7 {offsets = [64, 0], sizes = [8, 32], strides = [1, 1]} : vector<128x32xf32> to vector<8x32xf32>
    %c0_12 = arith.constant 0 : index
    %c256 = arith.constant 256 : index
    %25 = vector.load %arg5[%c0_12, %c256] : memref<8x512xf32, #tpu.memory_space<vmem>>, vector<8x32xf32>
    tpu.vector_store %arg5[%c0_12, %c256], %24 {strides = array<i32>} : memref<8x512xf32, #tpu.memory_space<vmem>>, vector<8x32xf32>,
    %26 = vector.extract_strided_slice %7 {offsets = [72, 0], sizes = [8, 32], strides = [1, 1]} : vector<128x32xf32> to vector<8x32xf32>
    %c0_13 = arith.constant 0 : index
    %c288 = arith.constant 288 : index
    %27 = vector.load %arg5[%c0_13, %c288] : memref<8x512xf32, #tpu.memory_space<vmem>>, vector<8x32xf32>
    tpu.vector_store %arg5[%c0_13, %c288], %26 {strides = array<i32>} : memref<8x512xf32, #tpu.memory_space<vmem>>, vector<8x32xf32>,
    %28 = vector.extract_strided_slice %7 {offsets = [80, 0], sizes = [8, 32], strides = [1, 1]} : vector<128x32xf32> to vector<8x32xf32>
    %c0_14 = arith.constant 0 : index
    %c320 = arith.constant 320 : index
    %29 = vector.load %arg5[%c0_14, %c320] : memref<8x512xf32, #tpu.memory_space<vmem>>, vector<8x32xf32>
    tpu.vector_store %arg5[%c0_14, %c320], %28 {strides = array<i32>} : memref<8x512xf32, #tpu.memory_space<vmem>>, vector<8x32xf32>,
    %30 = vector.extract_strided_slice %7 {offsets = [88, 0], sizes = [8, 32], strides = [1, 1]} : vector<128x32xf32> to vector<8x32xf32>
    %c0_15 = arith.constant 0 : index
    %c352 = arith.constant 352 : index
    %31 = vector.load %arg5[%c0_15, %c352] : memref<8x512xf32, #tpu.memory_space<vmem>>, vector<8x32xf32>
    tpu.vector_store %arg5[%c0_15, %c352], %30 {strides = array<i32>} : memref<8x512xf32, #tpu.memory_space<vmem>>, vector<8x32xf32>,
    %32 = vector.extract_strided_slice %7 {offsets = [96, 0], sizes = [8, 32], strides = [1, 1]} : vector<128x32xf32> to vector<8x32xf32>
    %c0_16 = arith.constant 0 : index
    %c384 = arith.constant 384 : index
    %33 = vector.load %arg5[%c0_16, %c384] : memref<8x512xf32, #tpu.memory_space<vmem>>, vector<8x32xf32>
    tpu.vector_store %arg5[%c0_16, %c384], %32 {strides = array<i32>} : memref<8x512xf32, #tpu.memory_space<vmem>>, vector<8x32xf32>,
    %34 = vector.extract_strided_slice %7 {offsets = [104, 0], sizes = [8, 32], strides = [1, 1]} : vector<128x32xf32> to vector<8x32xf32>
    %c0_17 = arith.constant 0 : index
    %c416 = arith.constant 416 : index
    %35 = vector.load %arg5[%c0_17, %c416] : memref<8x512xf32, #tpu.memory_space<vmem>>, vector<8x32xf32>
    tpu.vector_store %arg5[%c0_17, %c416], %34 {strides = array<i32>} : memref<8x512xf32, #tpu.memory_space<vmem>>, vector<8x32xf32>,
    %36 = vector.extract_strided_slice %7 {offsets = [112, 0], sizes = [8, 32], strides = [1, 1]} : vector<128x32xf32> to vector<8x32xf32>
    %c0_18 = arith.constant 0 : index
    %c448 = arith.constant 448 : index
    %37 = vector.load %arg5[%c0_18, %c448] : memref<8x512xf32, #tpu.memory_space<vmem>>, vector<8x32xf32>
    tpu.vector_store %arg5[%c0_18, %c448], %36 {strides = array<i32>} : memref<8x512xf32, #tpu.memory_space<vmem>>, vector<8x32xf32>,
    %38 = vector.extract_strided_slice %7 {offsets = [120, 0], sizes = [8, 32], strides = [1, 1]} : vector<128x32xf32> to vector<8x32xf32>
    %c0_19 = arith.constant 0 : index
    %c480 = arith.constant 480 : index
    %39 = vector.load %arg5[%c0_19, %c480] : memref<8x512xf32, #tpu.memory_space<vmem>>, vector<8x32xf32>
    tpu.vector_store %arg5[%c0_19, %c480], %38 {strides = array<i32>} : memref<8x512xf32, #tpu.memory_space<vmem>>, vector<8x32xf32>,
    %c0_20 = arith.constant 0 : index
    %c0_21 = arith.constant 0 : index
    %40 = vector.load %arg5[%c0_20, %c0_21] : memref<8x512xf32, #tpu.memory_space<vmem>>, vector<8x512xf32>
    %c0_22 = arith.constant 0 : index
    %c0_23 = arith.constant 0 : index
    %41 = vector.load %arg2[%c0_22, %c0_23] : memref<512x256xf32, #tpu.memory_space<vmem>>, vector<512x256xf32>
    %cst_24 = arith.constant dense<0.000000e+00> : vector<8x256xf32>
    %42 = tpu.matmul %40, %41, %cst_24 {dimension_numbers = #tpu.dot_dimension_numbers<[1], [0], [0], [1], [0, 0, 1, 1], [], []>} : vector<8x512xf32>, vector<512x256xf32>, vector<8x256xf32> -> vector<8x256xf32>
    %c0_25 = arith.constant 0 : index
    %c0_26 = arith.constant 0 : index
    %43 = vector.load %arg3[%c0_25, %c0_26] : memref<3x256xf32, #tpu.memory_space<vmem>>, vector<1x256xf32>
    %44 = vector.broadcast %43 : vector<1x256xf32> to vector<8x256xf32>
    %45 = arith.addf %42, %44 : vector<8x256xf32>
    %c1 = arith.constant 1 : index
    %c0_27 = arith.constant 0 : index
    %46 = vector.load %arg3[%c1, %c0_27] : memref<3x256xf32, #tpu.memory_space<vmem>>, vector<1x256xf32>
    %47 = vector.broadcast %46 : vector<1x256xf32> to vector<8x256xf32>
    %48 = arith.mulf %45, %47 : vector<8x256xf32>
    %cst_28 = arith.constant dense<0.000000e+00> : vector<8xf32>
    %49 = vector.multi_reduction <add>, %48, %cst_28 [1] : vector<8x256xf32> to vector<8xf32>
    %50 = vector.shape_cast %49 : vector<8xf32> to vector<8x1xf32>
    %c2 = arith.constant 2 : index
    %c0_29 = arith.constant 0 : index
    %51 = vector.load %arg3[%c2, %c0_29] : memref<3x256xf32, #tpu.memory_space<vmem>>, vector<1x1xf32>
    %52 = vector.broadcast %51 : vector<1x1xf32> to vector<8x1xf32>
    %53 = arith.addf %50, %52 : vector<8x1xf32>
    %54 = arith.negf %53 : vector<8x1xf32>
    %55 = math.exp %54 : vector<8x1xf32>
    %cst_30 = arith.constant 1.000000e+00 : f32
    %56 = vector.broadcast %cst_30 : f32 to vector<8x1xf32>
    %57 = arith.addf %56, %55 : vector<8x1xf32>
    %58 = arith.divf %56, %57 : vector<8x1xf32>
    %cst_31 = arith.constant 9.000000e+00 : f32
    %59 = vector.broadcast %cst_31 : f32 to vector<8x1xf32>
    %60 = arith.mulf %58, %59 : vector<8x1xf32>
    %cst_32 = arith.constant 1.000000e+00 : f32
    %61 = vector.broadcast %cst_32 : f32 to vector<8x1xf32>
    %62 = arith.addf %60, %61 : vector<8x1xf32>
    %c0_33 = arith.constant 0 : index
    %c0_34 = arith.constant 0 : index
    %63 = vector.load %arg4[%c0_33, %c0_34] : memref<8x1xf32, #tpu.memory_space<vmem>>, vector<8x1xf32>
    tpu.vector_store %arg4[%c0_33, %c0_34], %62 {strides = array<i32>} : memref<8x1xf32, #tpu.memory_space<vmem>>, vector<8x1xf32>,
    return
  }
}

</mosaic_0001>

<llo_original>
// kernel: regression_forward.1
$region0: #{regression_forward.1}
  #allocation0 [shape = 'u32[]', space=smem, size = 0x4, offset = 0x4, fixed_abs, tag = 'smem constant byte address 0x4 - core index']
  #allocation1 [shape = 'u32[72,128]{1,0:T(1,128)}', space=vmem, size = 0x9000, scoped, tag = 'internal scratch']
  #allocation2 [shape = 'f32[8,512]{1,0:T(8,128)}', space=vmem, size = 0x4000, scoped, tag = 'scratch operand']
  %s0 = inlined_call_operand.vmem [shape: s32[128,1], index: 0, kind: input, shape index: {}]
  %s1 = inlined_call_operand.vmem [shape: f32[256,32], index: 1, kind: input, shape index: {}]
  %s2 = inlined_call_operand.hbm [shape: f32[512,256], index: 2, kind: input, shape index: {}]
  %s3 = inlined_call_operand.vmem [shape: f32[3,256], index: 3, kind: input, shape index: {}]
  %s4 = inlined_call_operand.vmem [shape: f32[8,1], index: 4, kind: output, shape index: {}]
  %s5 = sld [smem:[#allocation0]]
  $region30: #{regression_forward.1} parent=0
    _
  %s7 = ssub.s32 1, %s5
  %s8 = scalar_select 0, %s7, %s5
  $region1: #{regression_forward.1} parent=0
    #allocation3 [shape = 'u8[524288]{0}', space=vmem, size = 0x80000, scoped, tag = 'input window, operand 2, single buffered']
    #allocation4 [shape = 's32[1]{0}', space=sflag, size = 0x4, scoped, tag = 'scoped memory for regression_forward.1']
    %9 = vsyncpa [#allocation4], 0
    // Predicated region
    $region2: #{regression_forward.1} parent=1 // pred_check
      _
    $region3: #{regression_forward.1} parent=1 // pred_check_branch
      %11 = sbr.rel (0) target = $region5
    $region4: #{regression_forward.1} parent=1 // pred_region
      _
    $region5: #{regression_forward.1} parent=1 // pred_fallthru
      _
    // Predicated region
    $region6: #{regression_forward.1} parent=1 // pred_check
      _
    $region7: #{regression_forward.1} parent=1 // pred_check_branch
      %13 = sbr.rel (0) target = $region9
    $region8: #{regression_forward.1} parent=1 // pred_region
      _
    $region9: #{regression_forward.1} parent=1 // pred_fallthru
      _
    // Predicated region
    $region10: #{regression_forward.1} parent=1 // pred_check
      _
    $region11: #{regression_forward.1} parent=1 // pred_check_branch
      %15 = sbr.rel (0) target = $region13
    $region12: #{regression_forward.1} parent=1 // pred_region
      %17 = vsyncadd [#allocation4], 0
      %s18 = sshll.u32 %s2, 4
      %s19 = int_to_ptr.hbm [resolvable:$true] %s18
      %s20 = sshll.u32 [#allocation3], 4
      %s21 = int_to_ptr.vmem [resolvable:$true] %s20
      %26 = dma.hbm_to_vmem [thread:$0]  %s19, 16384, %s21, [#allocation4], 256, 256, 16
    $region13: #{regression_forward.1} parent=1 // pred_fallthru
      _
    // Predicated region
    $region14: #{regression_forward.1} parent=1 // pred_check
      _
    $region15: #{regression_forward.1} parent=1 // pred_check_branch
      %28 = sbr.rel (0) target = $region17
    $region16: #{regression_forward.1} parent=1 // pred_region
      _
    $region17: #{regression_forward.1} parent=1 // pred_fallthru
      _
    // Predicated region
    $region18: #{regression_forward.1} parent=1 // pred_check
      _
    $region19: #{regression_forward.1} parent=1 // pred_check_branch
      %30 = sbr.rel (0) target = $region21
    $region20: #{regression_forward.1} parent=1 // pred_region
      %32 = dma.done [#allocation4], 16384
    $region21: #{regression_forward.1} parent=1 // pred_fallthru
      _
    %v33 = vlaneseq
    %v34 = vand.u32 %v33, 127
    %v35 = vadd.s32 %v34, 128
    %v36 = vld [vmem:[%s0] sm:$0xff]
    %v37 = vld [vmem:[%s0 + $0x8] sm:$0xff]
    %v38 = vld [vmem:[%s0 + $0x10] sm:$0xff]
    %v39 = vld [vmem:[%s0 + $0x18] sm:$0xff]
    %v40 = vld [vmem:[%s0 + $0x20] sm:$0xff]
    %v41 = vld [vmem:[%s0 + $0x28] sm:$0xff]
    %v42 = vld [vmem:[%s0 + $0x30] sm:$0xff]
    %v43 = vld [vmem:[%s0 + $0x38] sm:$0xff]
    %v44 = vld [vmem:[%s0 + $0x40] sm:$0xff]
    %v45 = vld [vmem:[%s0 + $0x48] sm:$0xff]
    %v46 = vld [vmem:[%s0 + $0x50] sm:$0xff]
    %v47 = vld [vmem:[%s0 + $0x58] sm:$0xff]
    %v48 = vld [vmem:[%s0 + $0x60] sm:$0xff]
    %v49 = vld [vmem:[%s0 + $0x68] sm:$0xff]
    %v50 = vld [vmem:[%s0 + $0x70] sm:$0xff]
    %v51 = vld [vmem:[%s0 + $0x78] sm:$0xff]
    %52 = vset.pattern.permute.xlu0 0
    %53 = vperm.xlu0 %52, %v36
    %v54 = vpop.permute.xlu0 %53
    %55 = vset.pattern.permute.xlu0 0
    %56 = vperm.xlu0 %55, %v37
    %v57 = vpop.permute.xlu0 %56
    %58 = vset.pattern.permute.xlu0 0
    %59 = vperm.xlu0 %58, %v38
    %v60 = vpop.permute.xlu0 %59
    %61 = vset.pattern.permute.xlu0 0
    %62 = vperm.xlu0 %61, %v39
    %v63 = vpop.permute.xlu0 %62
    %64 = vset.pattern.permute.xlu0 0
    %65 = vperm.xlu0 %64, %v40
    %v66 = vpop.permute.xlu0 %65
    %67 = vset.pattern.permute.xlu0 0
    %68 = vperm.xlu0 %67, %v41
    %v69 = vpop.permute.xlu0 %68
    %70 = vset.pattern.permute.xlu0 0
    %71 = vperm.xlu0 %70, %v42
    %v72 = vpop.permute.xlu0 %71
    %73 = vset.pattern.permute.xlu0 0
    %74 = vperm.xlu0 %73, %v43
    %v75 = vpop.permute.xlu0 %74
    %76 = vset.pattern.permute.xlu0 0
    %77 = vperm.xlu0 %76, %v44
    %v78 = vpop.permute.xlu0 %77
    %79 = vset.pattern.permute.xlu0 0
    %80 = vperm.xlu0 %79, %v45
    %v81 = vpop.permute.xlu0 %80
    %82 = vset.pattern.permute.xlu0 0
    %83 = vperm.xlu0 %82, %v46
    %v84 = vpop.permute.xlu0 %83
    %85 = vset.pattern.permute.xlu0 0
    %86 = vperm.xlu0 %85, %v47
    %v87 = vpop.permute.xlu0 %86
    %88 = vset.pattern.permute.xlu0 0
    %89 = vperm.xlu0 %88, %v48
    %v90 = vpop.permute.xlu0 %89
    %91 = vset.pattern.permute.xlu0 0
    %92 = vperm.xlu0 %91, %v49
    %v93 = vpop.permute.xlu0 %92
    %94 = vset.pattern.permute.xlu0 0
    %95 = vperm.xlu0 %94, %v50
    %v96 = vpop.permute.xlu0 %95
    %97 = vset.pattern.permute.xlu0 0
    %98 = vperm.xlu0 %97, %v51
    %v99 = vpop.permute.xlu0 %98
    %vm100 = vcmp.eq.s32.totalorder %v54, %v34
    %vm101 = vcmp.eq.s32.totalorder %v54, %v35
    %vm102 = vcmp.eq.s32.totalorder %v57, %v34
    %vm103 = vcmp.eq.s32.totalorder %v57, %v35
    %vm104 = vcmp.eq.s32.totalorder %v60, %v34
    %vm105 = vcmp.eq.s32.totalorder %v60, %v35
    %vm106 = vcmp.eq.s32.totalorder %v63, %v34
    %vm107 = vcmp.eq.s32.totalorder %v63, %v35
    %vm108 = vcmp.eq.s32.totalorder %v66, %v34
    %vm109 = vcmp.eq.s32.totalorder %v66, %v35
    %vm110 = vcmp.eq.s32.totalorder %v69, %v34
    %vm111 = vcmp.eq.s32.totalorder %v69, %v35
    %vm112 = vcmp.eq.s32.totalorder %v72, %v34
    %vm113 = vcmp.eq.s32.totalorder %v72, %v35
    %vm114 = vcmp.eq.s32.totalorder %v75, %v34
    %vm115 = vcmp.eq.s32.totalorder %v75, %v35
    %vm116 = vcmp.eq.s32.totalorder %v78, %v34
    %vm117 = vcmp.eq.s32.totalorder %v78, %v35
    %vm118 = vcmp.eq.s32.totalorder %v81, %v34
    %vm119 = vcmp.eq.s32.totalorder %v81, %v35
    %vm120 = vcmp.eq.s32.totalorder %v84, %v34
    %vm121 = vcmp.eq.s32.totalorder %v84, %v35
    %vm122 = vcmp.eq.s32.totalorder %v87, %v34
    %vm123 = vcmp.eq.s32.totalorder %v87, %v35
    %vm124 = vcmp.eq.s32.totalorder %v90, %v34
    %vm125 = vcmp.eq.s32.totalorder %v90, %v35
    %vm126 = vcmp.eq.s32.totalorder %v93, %v34
    %vm127 = vcmp.eq.s32.totalorder %v93, %v35
    %vm128 = vcmp.eq.s32.totalorder %v96, %v34
    %vm129 = vcmp.eq.s32.totalorder %v96, %v35
    %vm130 = vcmp.eq.s32.totalorder %v99, %v34
    %vm131 = vcmp.eq.s32.totalorder %v99, %v35
    %v132 = vsel %vm100, 1, 0
    %v133 = vsel %vm101, 1, 0
    %v134 = vsel %vm102, 1, 0
    %v135 = vsel %vm103, 1, 0
    %v136 = vsel %vm104, 1, 0
    %v137 = vsel %vm105, 1, 0
    %v138 = vsel %vm106, 1, 0
    %v139 = vsel %vm107, 1, 0
    %v140 = vsel %vm108, 1, 0
    %v141 = vsel %vm109, 1, 0
    %v142 = vsel %vm110, 1, 0
    %v143 = vsel %vm111, 1, 0
    %v144 = vsel %vm112, 1, 0
    %v145 = vsel %vm113, 1, 0
    %v146 = vsel %vm114, 1, 0
    %v147 = vsel %vm115, 1, 0
    %v148 = vsel %vm116, 1, 0
    %v149 = vsel %vm117, 1, 0
    %v150 = vsel %vm118, 1, 0
    %v151 = vsel %vm119, 1, 0
    %v152 = vsel %vm120, 1, 0
    %v153 = vsel %vm121, 1, 0
    %v154 = vsel %vm122, 1, 0
    %v155 = vsel %vm123, 1, 0
    %v156 = vsel %vm124, 1, 0
    %v157 = vsel %vm125, 1, 0
    %v158 = vsel %vm126, 1, 0
    %v159 = vsel %vm127, 1, 0
    %v160 = vsel %vm128, 1, 0
    %v161 = vsel %vm129, 1, 0
    %v162 = vsel %vm130, 1, 0
    %v163 = vsel %vm131, 1, 0
    %v164 = vcvt.s32.f32 %v132
    %v165 = vcvt.s32.f32 %v133
    %v166 = vcvt.s32.f32 %v134
    %v167 = vcvt.s32.f32 %v135
    %v168 = vcvt.s32.f32 %v136
    %v169 = vcvt.s32.f32 %v137
    %v170 = vcvt.s32.f32 %v138
    %v171 = vcvt.s32.f32 %v139
    %v172 = vcvt.s32.f32 %v140
    %v173 = vcvt.s32.f32 %v141
    %v174 = vcvt.s32.f32 %v142
    %v175 = vcvt.s32.f32 %v143
    %v176 = vcvt.s32.f32 %v144
    %v177 = vcvt.s32.f32 %v145
    %v178 = vcvt.s32.f32 %v146
    %v179 = vcvt.s32.f32 %v147
    %v180 = vcvt.s32.f32 %v148
    %v181 = vcvt.s32.f32 %v149
    %v182 = vcvt.s32.f32 %v150
    %v183 = vcvt.s32.f32 %v151
    %v184 = vcvt.s32.f32 %v152
    %v185 = vcvt.s32.f32 %v153
    %v186 = vcvt.s32.f32 %v154
    %v187 = vcvt.s32.f32 %v155
    %v188 = vcvt.s32.f32 %v156
    %v189 = vcvt.s32.f32 %v157
    %v190 = vcvt.s32.f32 %v158
    %v191 = vcvt.s32.f32 %v159
    %v192 = vcvt.s32.f32 %v160
    %v193 = vcvt.s32.f32 %v161
    %v194 = vcvt.s32.f32 %v162
    %v195 = vcvt.s32.f32 %v163
    %v196 = vld [vmem:[%s1] sm:$0xff]
    %v197 = vld [vmem:[%s1 + $0x8] sm:$0xff]
    %v198 = vld [vmem:[%s1 + $0x10] sm:$0xff]
    %v199 = vld [vmem:[%s1 + $0x18] sm:$0xff]
    %v200 = vld [vmem:[%s1 + $0x20] sm:$0xff]
    %v201 = vld [vmem:[%s1 + $0x28] sm:$0xff]
    %v202 = vld [vmem:[%s1 + $0x30] sm:$0xff]
    %v203 = vld [vmem:[%s1 + $0x38] sm:$0xff]
    %v204 = vld [vmem:[%s1 + $0x40] sm:$0xff]
    %v205 = vld [vmem:[%s1 + $0x48] sm:$0xff]
    %v206 = vld [vmem:[%s1 + $0x50] sm:$0xff]
    %v207 = vld [vmem:[%s1 + $0x58] sm:$0xff]
    %v208 = vld [vmem:[%s1 + $0x60] sm:$0xff]
    %v209 = vld [vmem:[%s1 + $0x68] sm:$0xff]
    %v210 = vld [vmem:[%s1 + $0x70] sm:$0xff]
    %v211 = vld [vmem:[%s1 + $0x78] sm:$0xff]
    %v212 = vld [vmem:[%s1 + $0x80] sm:$0xff]
    %v213 = vld [vmem:[%s1 + $0x88] sm:$0xff]
    %v214 = vld [vmem:[%s1 + $0x90] sm:$0xff]
    %v215 = vld [vmem:[%s1 + $0x98] sm:$0xff]
    %v216 = vld [vmem:[%s1 + $0xa0] sm:$0xff]
    %v217 = vld [vmem:[%s1 + $0xa8] sm:$0xff]
    %v218 = vld [vmem:[%s1 + $0xb0] sm:$0xff]
    %v219 = vld [vmem:[%s1 + $0xb8] sm:$0xff]
    %v220 = vld [vmem:[%s1 + $0xc0] sm:$0xff]
    %v221 = vld [vmem:[%s1 + $0xc8] sm:$0xff]
    %v222 = vld [vmem:[%s1 + $0xd0] sm:$0xff]
    %v223 = vld [vmem:[%s1 + $0xd8] sm:$0xff]
    %v224 = vld [vmem:[%s1 + $0xe0] sm:$0xff]
    %v225 = vld [vmem:[%s1 + $0xe8] sm:$0xff]
    %v226 = vld [vmem:[%s1 + $0xf0] sm:$0xff]
    %v227 = vld [vmem:[%s1 + $0xf8] sm:$0xff]
    %228 = vmatpush.msra.mxu0 %v211
    %229 = vmatpush.msra.mxu0 %v210
    %230 = vmatpush.msra.mxu0 %v209
    %231 = vmatpush.msra.mxu0 %v208
    %232 = vmatpush.msra.mxu0 %v207
    %233 = vmatpush.msra.mxu0 %v206
    %234 = vmatpush.msra.mxu0 %v205
    %235 = vmatpush.msra.mxu0 %v204
    %236 = vmatpush.msra.mxu0 %v203
    %237 = vmatpush.msra.mxu0 %v202
    %238 = vmatpush.msra.mxu0 %v201
    %239 = vmatpush.msra.mxu0 %v200
    %240 = vmatpush.msra.mxu0 %v199
    %241 = vmatpush.msra.mxu0 %v198
    %242 = vmatpush.msra.mxu0 %v197
    %243 = vmatpush.msra.mxu0 %v196
    %244 = vmatmul.f32.gmra.mxu0 %v164
    %v245 = vpop.f32.mrf.mxu0
    %v246 = vadd.f32 0.0, %v245
    %247 = vmatmul.f32.gmra.mxu0 %v166
    %v248 = vpop.f32.mrf.mxu0
    %v249 = vadd.f32 0.0, %v248
    %250 = vmatmul.f32.gmra.mxu0 %v168
    %v251 = vpop.f32.mrf.mxu0
    %v252 = vadd.f32 0.0, %v251
    %253 = vmatmul.f32.gmra.mxu0 %v170
    %v254 = vpop.f32.mrf.mxu0
    %v255 = vadd.f32 0.0, %v254
    %256 = vmatmul.f32.gmra.mxu0 %v172
    %v257 = vpop.f32.mrf.mxu0
    %v258 = vadd.f32 0.0, %v257
    %259 = vmatmul.f32.gmra.mxu0 %v174
    %v260 = vpop.f32.mrf.mxu0
    %v261 = vadd.f32 0.0, %v260
    %262 = vmatmul.f32.gmra.mxu0 %v176
    %v263 = vpop.f32.mrf.mxu0
    %v264 = vadd.f32 0.0, %v263
    %265 = vmatmul.f32.gmra.mxu0 %v178
    %v266 = vpop.f32.mrf.mxu0
    %v267 = vadd.f32 0.0, %v266
    %268 = vmatmul.f32.gmra.mxu0 %v180
    %v269 = vpop.f32.mrf.mxu0
    %v270 = vadd.f32 0.0, %v269
    %271 = vmatmul.f32.gmra.mxu0 %v182
    %v272 = vpop.f32.mrf.mxu0
    %v273 = vadd.f32 0.0, %v272
    %274 = vmatmul.f32.gmra.mxu0 %v184
    %v275 = vpop.f32.mrf.mxu0
    %v276 = vadd.f32 0.0, %v275
    %277 = vmatmul.f32.gmra.mxu0 %v186
    %v278 = vpop.f32.mrf.mxu0
    %v279 = vadd.f32 0.0, %v278
    %280 = vmatmul.f32.gmra.mxu0 %v188
    %v281 = vpop.f32.mrf.mxu0
    %v282 = vadd.f32 0.0, %v281
    %283 = vmatmul.f32.gmra.mxu0 %v190
    %v284 = vpop.f32.mrf.mxu0
    %v285 = vadd.f32 0.0, %v284
    %286 = vmatmul.f32.gmra.mxu0 %v192
    %v287 = vpop.f32.mrf.mxu0
    %v288 = vadd.f32 0.0, %v287
    %289 = vmatmul.f32.gmra.mxu0 %v194
    %v290 = vpop.f32.mrf.mxu0
    %v291 = vadd.f32 0.0, %v290
    %292 = vdwg.mxu0
    %293 = vmatpush.msra.mxu0 %v227
    %294 = vmatpush.msra.mxu0 %v226
    %295 = vmatpush.msra.mxu0 %v225
    %296 = vmatpush.msra.mxu0 %v224
    %297 = vmatpush.msra.mxu0 %v223
    %298 = vmatpush.msra.mxu0 %v222
    %299 = vmatpush.msra.mxu0 %v221
    %300 = vmatpush.msra.mxu0 %v220
    %301 = vmatpush.msra.mxu0 %v219
    %302 = vmatpush.msra.mxu0 %v218
    %303 = vmatpush.msra.mxu0 %v217
    %304 = vmatpush.msra.mxu0 %v216
    %305 = vmatpush.msra.mxu0 %v215
    %306 = vmatpush.msra.mxu0 %v214
    %307 = vmatpush.msra.mxu0 %v213
    %308 = vmatpush.msra.mxu0 %v212
    %309 = vmatmul.f32.gmra.mxu0 %v165
    %v310 = vpop.f32.mrf.mxu0
    %v311 = vadd.f32 %v246, %v310
    %312 = vmatmul.f32.gmra.mxu0 %v167
    %v313 = vpop.f32.mrf.mxu0
    %v314 = vadd.f32 %v249, %v313
    %315 = vmatmul.f32.gmra.mxu0 %v169
    %v316 = vpop.f32.mrf.mxu0
    %v317 = vadd.f32 %v252, %v316
    %318 = vmatmul.f32.gmra.mxu0 %v171
    %v319 = vpop.f32.mrf.mxu0
    %v320 = vadd.f32 %v255, %v319
    %321 = vmatmul.f32.gmra.mxu0 %v173
    %v322 = vpop.f32.mrf.mxu0
    %v323 = vadd.f32 %v258, %v322
    %324 = vmatmul.f32.gmra.mxu0 %v175
    %v325 = vpop.f32.mrf.mxu0
    %v326 = vadd.f32 %v261, %v325
    %327 = vmatmul.f32.gmra.mxu0 %v177
    %v328 = vpop.f32.mrf.mxu0
    %v329 = vadd.f32 %v264, %v328
    %330 = vmatmul.f32.gmra.mxu0 %v179
    %v331 = vpop.f32.mrf.mxu0
    %v332 = vadd.f32 %v267, %v331
    %333 = vmatmul.f32.gmra.mxu0 %v181
    %v334 = vpop.f32.mrf.mxu0
    %v335 = vadd.f32 %v270, %v334
    %336 = vmatmul.f32.gmra.mxu0 %v183
    %v337 = vpop.f32.mrf.mxu0
    %v338 = vadd.f32 %v273, %v337
    %339 = vmatmul.f32.gmra.mxu0 %v185
    %v340 = vpop.f32.mrf.mxu0
    %v341 = vadd.f32 %v276, %v340
    %342 = vmatmul.f32.gmra.mxu0 %v187
    %v343 = vpop.f32.mrf.mxu0
    %v344 = vadd.f32 %v279, %v343
    %345 = vmatmul.f32.gmra.mxu0 %v189
    %v346 = vpop.f32.mrf.mxu0
    %v347 = vadd.f32 %v282, %v346
    %348 = vmatmul.f32.gmra.mxu0 %v191
    %v349 = vpop.f32.mrf.mxu0
    %v350 = vadd.f32 %v285, %v349
    %351 = vmatmul.f32.gmra.mxu0 %v193
    %v352 = vpop.f32.mrf.mxu0
    %v353 = vadd.f32 %v288, %v352
    %354 = vmatmul.f32.gmra.mxu0 %v195
    %v355 = vpop.f32.mrf.mxu0
    %v356 = vadd.f32 %v291, %v355
    %357 = vdwg.mxu0
    %vm358 = vcmask 261120
    %359 = vst.msk [vmem:[#allocation2] sm:$0xff] %vm358, %v311
    %361 = vrot.lane.b32.xlu0 %v314, 32
    %v362 = vpop.permute.xlu0 %361
    %vm364 = vcmask 523520
    %365 = vst.msk [vmem:[#allocation2] sm:$0xff] %vm364, %v362
    %367 = vrot.lane.b32.xlu0 %v317, 64
    %v368 = vpop.permute.xlu0 %367
    %vm370 = vcmask 785920
    %371 = vst.msk [vmem:[#allocation2] sm:$0xff] %vm370, %v368
    %373 = vrot.lane.b32.xlu0 %v320, 96
    %v374 = vpop.permute.xlu0 %373
    %vm376 = vcmask 1048320
    %377 = vst.msk [vmem:[#allocation2] sm:$0xff] %vm376, %v374
    %378 = vst.msk [vmem:[#allocation2 + $0x8] sm:$0xff] %vm358, %v323
    %380 = vrot.lane.b32.xlu0 %v326, 32
    %v381 = vpop.permute.xlu0 %380
    %383 = vst.msk [vmem:[#allocation2 + $0x8] sm:$0xff] %vm364, %v381
    %385 = vrot.lane.b32.xlu0 %v329, 64
    %v386 = vpop.permute.xlu0 %385
    %388 = vst.msk [vmem:[#allocation2 + $0x8] sm:$0xff] %vm370, %v386
    %390 = vrot.lane.b32.xlu0 %v332, 96
    %v391 = vpop.permute.xlu0 %390
    %393 = vst.msk [vmem:[#allocation2 + $0x8] sm:$0xff] %vm376, %v391
    %394 = vst.msk [vmem:[#allocation2 + $0x10] sm:$0xff] %vm358, %v335
    %396 = vrot.lane.b32.xlu0 %v338, 32
    %v397 = vpop.permute.xlu0 %396
    %399 = vst.msk [vmem:[#allocation2 + $0x10] sm:$0xff] %vm364, %v397
    %401 = vrot.lane.b32.xlu0 %v341, 64
    %v402 = vpop.permute.xlu0 %401
    %404 = vst.msk [vmem:[#allocation2 + $0x10] sm:$0xff] %vm370, %v402
    %406 = vrot.lane.b32.xlu0 %v344, 96
    %v407 = vpop.permute.xlu0 %406
    %409 = vst.msk [vmem:[#allocation2 + $0x10] sm:$0xff] %vm376, %v407
    %410 = vst.msk [vmem:[#allocation2 + $0x18] sm:$0xff] %vm358, %v347
    %412 = vrot.lane.b32.xlu0 %v350, 32
    %v413 = vpop.permute.xlu0 %412
    %415 = vst.msk [vmem:[#allocation2 + $0x18] sm:$0xff] %vm364, %v413
    %417 = vrot.lane.b32.xlu0 %v353, 64
    %v418 = vpop.permute.xlu0 %417
    %420 = vst.msk [vmem:[#allocation2 + $0x18] sm:$0xff] %vm370, %v418
    %422 = vrot.lane.b32.xlu0 %v356, 96
    %v423 = vpop.permute.xlu0 %422
    %425 = vst.msk [vmem:[#allocation2 + $0x18] sm:$0xff] %vm376, %v423
    %v426 = vld [vmem:[#allocation2] sm:$0xff]
    %v427 = vld [vmem:[#allocation2 + $0x8] sm:$0xff]
    %v428 = vld [vmem:[#allocation2 + $0x10] sm:$0xff]
    %v429 = vld [vmem:[#allocation2 + $0x18] sm:$0xff]
    %v430 = vld [vmem:[#allocation3] sm:$0xff]
    %v431 = vld [vmem:[#allocation3 + $0x8] sm:$0xff]
    %v432 = vld [vmem:[#allocation3 + $0x10] sm:$0xff]
    %v433 = vld [vmem:[#allocation3 + $0x18] sm:$0xff]
    %v434 = vld [vmem:[#allocation3 + $0x20] sm:$0xff]
    %v435 = vld [vmem:[#allocation3 + $0x28] sm:$0xff]
    %v436 = vld [vmem:[#allocation3 + $0x30] sm:$0xff]
    %v437 = vld [vmem:[#allocation3 + $0x38] sm:$0xff]
    %v438 = vld [vmem:[#allocation3 + $0x40] sm:$0xff]
    %v439 = vld [vmem:[#allocation3 + $0x48] sm:$0xff]
    %v440 = vld [vmem:[#allocation3 + $0x50] sm:$0xff]
    %v441 = vld [vmem:[#allocation3 + $0x58] sm:$0xff]
    %v442 = vld [vmem:[#allocation3 + $0x60] sm:$0xff]
    %v443 = vld [vmem:[#allocation3 + $0x68] sm:$0xff]
    %v444 = vld [vmem:[#allocation3 + $0x70] sm:$0xff]
    %v445 = vld [vmem:[#allocation3 + $0x78] sm:$0xff]
    %v446 = vld [vmem:[#allocation3 + $0x80] sm:$0xff]
    %v447 = vld [vmem:[#allocation3 + $0x88] sm:$0xff]
    %v448 = vld [vmem:[#allocation3 + $0x90] sm:$0xff]
    %v449 = vld [vmem:[#allocation3 + $0x98] sm:$0xff]
    %v450 = vld [vmem:[#allocation3 + $0xa0] sm:$0xff]
    %v451 = vld [vmem:[#allocation3 + $0xa8] sm:$0xff]
    %v452 = vld [vmem:[#allocation3 + $0xb0] sm:$0xff]
    %v453 = vld [vmem:[#allocation3 + $0xb8] sm:$0xff]
    %v454 = vld [vmem:[#allocation3 + $0xc0] sm:$0xff]
    %v455 = vld [vmem:[#allocation3 + $0xc8] sm:$0xff]
    %v456 = vld [vmem:[#allocation3 + $0xd0] sm:$0xff]
    %v457 = vld [vmem:[#allocation3 + $0xd8] sm:$0xff]
    %v458 = vld [vmem:[#allocation3 + $0xe0] sm:$0xff]
    %v459 = vld [vmem:[#allocation3 + $0xe8] sm:$0xff]
    %v460 = vld [vmem:[#allocation3 + $0xf0] sm:$0xff]
    %v461 = vld [vmem:[#allocation3 + $0xf8] sm:$0xff]
    %v462 = vld [vmem:[#allocation3 + $0x100] sm:$0xff]
    %v463 = vld [vmem:[#allocation3 + $0x108] sm:$0xff]
    %v464 = vld [vmem:[#allocation3 + $0x110] sm:$0xff]
    %v465 = vld [vmem:[#allocation3 + $0x118] sm:$0xff]
    %v466 = vld [vmem:[#allocation3 + $0x120] sm:$0xff]
    %v467 = vld [vmem:[#allocation3 + $0x128] sm:$0xff]
    %v468 = vld [vmem:[#allocation3 + $0x130] sm:$0xff]
    %v469 = vld [vmem:[#allocation3 + $0x138] sm:$0xff]
    %v470 = vld [vmem:[#allocation3 + $0x140] sm:$0xff]
    %v471 = vld [vmem:[#allocation3 + $0x148] sm:$0xff]
    %v472 = vld [vmem:[#allocation3 + $0x150] sm:$0xff]
    %v473 = vld [vmem:[#allocation3 + $0x158] sm:$0xff]
    %v474 = vld [vmem:[#allocation3 + $0x160] sm:$0xff]
    %v475 = vld [vmem:[#allocation3 + $0x168] sm:$0xff]
    %v476 = vld [vmem:[#allocation3 + $0x170] sm:$0xff]
    %v477 = vld [vmem:[#allocation3 + $0x178] sm:$0xff]
    %v478 = vld [vmem:[#allocation3 + $0x180] sm:$0xff]
    %v479 = vld [vmem:[#allocation3 + $0x188] sm:$0xff]
    %v480 = vld [vmem:[#allocation3 + $0x190] sm:$0xff]
    %v481 = vld [vmem:[#allocation3 + $0x198] sm:$0xff]
    %v482 = vld [vmem:[#allocation3 + $0x1a0] sm:$0xff]
    %v483 = vld [vmem:[#allocation3 + $0x1a8] sm:$0xff]
    %v484 = vld [vmem:[#allocation3 + $0x1b0] sm:$0xff]
    %v485 = vld [vmem:[#allocation3 + $0x1b8] sm:$0xff]
    %v486 = vld [vmem:[#allocation3 + $0x1c0] sm:$0xff]
    %v487 = vld [vmem:[#allocation3 + $0x1c8] sm:$0xff]
    %v488 = vld [vmem:[#allocation3 + $0x1d0] sm:$0xff]
    %v489 = vld [vmem:[#allocation3 + $0x1d8] sm:$0xff]
    %v490 = vld [vmem:[#allocation3 + $0x1e0] sm:$0xff]
    %v491 = vld [vmem:[#allocation3 + $0x1e8] sm:$0xff]
    %v492 = vld [vmem:[#allocation3 + $0x1f0] sm:$0xff]
    %v493 = vld [vmem:[#allocation3 + $0x1f8] sm:$0xff]
    %v494 = vld [vmem:[#allocation3 + $0x200] sm:$0xff]
    %v495 = vld [vmem:[#allocation3 + $0x208] sm:$0xff]
    %v496 = vld [vmem:[#allocation3 + $0x210] sm:$0xff]
    %v497 = vld [vmem:[#allocation3 + $0x218] sm:$0xff]
    %v498 = vld [vmem:[#allocation3 + $0x220] sm:$0xff]
    %v499 = vld [vmem:[#allocation3 + $0x228] sm:$0xff]
    %v500 = vld [vmem:[#allocation3 + $0x230] sm:$0xff]
    %v501 = vld [vmem:[#allocation3 + $0x238] sm:$0xff]
    %v502 = vld [vmem:[#allocation3 + $0x240] sm:$0xff]
    %v503 = vld [vmem:[#allocation3 + $0x248] sm:$0xff]
    %v504 = vld [vmem:[#allocation3 + $0x250] sm:$0xff]
    %v505 = vld [vmem:[#allocation3 + $0x258] sm:$0xff]
    %v506 = vld [vmem:[#allocation3 + $0x260] sm:$0xff]
    %v507 = vld [vmem:[#allocation3 + $0x268] sm:$0xff]
    %v508 = vld [vmem:[#allocation3 + $0x270] sm:$0xff]
    %v509 = vld [vmem:[#allocation3 + $0x278] sm:$0xff]
    %v510 = vld [vmem:[#allocation3 + $0x280] sm:$0xff]
    %v511 = vld [vmem:[#allocation3 + $0x288] sm:$0xff]
    %v512 = vld [vmem:[#allocation3 + $0x290] sm:$0xff]
    %v513 = vld [vmem:[#allocation3 + $0x298] sm:$0xff]
    %v514 = vld [vmem:[#allocation3 + $0x2a0] sm:$0xff]
    %v515 = vld [vmem:[#allocation3 + $0x2a8] sm:$0xff]
    %v516 = vld [vmem:[#allocation3 + $0x2b0] sm:$0xff]
    %v517 = vld [vmem:[#allocation3 + $0x2b8] sm:$0xff]
    %v518 = vld [vmem:[#allocation3 + $0x2c0] sm:$0xff]
    %v519 = vld [vmem:[#allocation3 + $0x2c8] sm:$0xff]
    %v520 = vld [vmem:[#allocation3 + $0x2d0] sm:$0xff]
    %v521 = vld [vmem:[#allocation3 + $0x2d8] sm:$0xff]
    %v522 = vld [vmem:[#allocation3 + $0x2e0] sm:$0xff]
    %v523 = vld [vmem:[#allocation3 + $0x2e8] sm:$0xff]
    %v524 = vld [vmem:[#allocation3 + $0x2f0] sm:$0xff]
    %v525 = vld [vmem:[#allocation3 + $0x2f8] sm:$0xff]
    %v526 = vld [vmem:[#allocation3 + $0x300] sm:$0xff]
    %v527 = vld [vmem:[#allocation3 + $0x308] sm:$0xff]
    %v528 = vld [vmem:[#allocation3 + $0x310] sm:$0xff]
    %v529 = vld [vmem:[#allocation3 + $0x318] sm:$0xff]
    %v530 = vld [vmem:[#allocation3 + $0x320] sm:$0xff]
    %v531 = vld [vmem:[#allocation3 + $0x328] sm:$0xff]
    %v532 = vld [vmem:[#allocation3 + $0x330] sm:$0xff]
    %v533 = vld [vmem:[#allocation3 + $0x338] sm:$0xff]
    %v534 = vld [vmem:[#allocation3 + $0x340] sm:$0xff]
    %v535 = vld [vmem:[#allocation3 + $0x348] sm:$0xff]
    %v536 = vld [vmem:[#allocation3 + $0x350] sm:$0xff]
    %v537 = vld [vmem:[#allocation3 + $0x358] sm:$0xff]
    %v538 = vld [vmem:[#allocation3 + $0x360] sm:$0xff]
    %v539 = vld [vmem:[#allocation3 + $0x368] sm:$0xff]
    %v540 = vld [vmem:[#allocation3 + $0x370] sm:$0xff]
    %v541 = vld [vmem:[#allocation3 + $0x378] sm:$0xff]
    %v542 = vld [vmem:[#allocation3 + $0x380] sm:$0xff]
    %v543 = vld [vmem:[#allocation3 + $0x388] sm:$0xff]
    %v544 = vld [vmem:[#allocation3 + $0x390] sm:$0xff]
    %v545 = vld [vmem:[#allocation3 + $0x398] sm:$0xff]
    %v546 = vld [vmem:[#allocation3 + $0x3a0] sm:$0xff]
    %v547 = vld [vmem:[#allocation3 + $0x3a8] sm:$0xff]
    %v548 = vld [vmem:[#allocation3 + $0x3b0] sm:$0xff]
    %v549 = vld [vmem:[#allocation3 + $0x3b8] sm:$0xff]
    %v550 = vld [vmem:[#allocation3 + $0x3c0] sm:$0xff]
    %v551 = vld [vmem:[#allocation3 + $0x3c8] sm:$0xff]
    %v552 = vld [vmem:[#allocation3 + $0x3d0] sm:$0xff]
    %v553 = vld [vmem:[#allocation3 + $0x3d8] sm:$0xff]
    %v554 = vld [vmem:[#allocation3 + $0x3e0] sm:$0xff]
    %v555 = vld [vmem:[#allocation3 + $0x3e8] sm:$0xff]
    %v556 = vld [vmem:[#allocation3 + $0x3f0] sm:$0xff]
    %v557 = vld [vmem:[#allocation3 + $0x3f8] sm:$0xff]
    %v558 = vld [vmem:[%s3] ss:$4 sm:$0x3]
    %v560 = vperm.slane %v558, 0
    %v561 = vperm.slane %v558, 1
    %564 = vmatpush.msra.mxu0 %v460
    %565 = vmatpush.msra.mxu0 %v458
    %566 = vmatpush.msra.mxu0 %v456
    %567 = vmatpush.msra.mxu0 %v454
    %568 = vmatpush.msra.mxu0 %v452
    %569 = vmatpush.msra.mxu0 %v450
    %570 = vmatpush.msra.mxu0 %v448
    %571 = vmatpush.msra.mxu0 %v446
    %572 = vmatpush.msra.mxu0 %v444
    %573 = vmatpush.msra.mxu0 %v442
    %574 = vmatpush.msra.mxu0 %v440
    %575 = vmatpush.msra.mxu0 %v438
    %576 = vmatpush.msra.mxu0 %v436
    %577 = vmatpush.msra.mxu0 %v434
    %578 = vmatpush.msra.mxu0 %v432
    %579 = vmatpush.msra.mxu0 %v430
    %580 = vmatmul.f32.gmra.mxu0 %v426
    %v581 = vpop.f32.mrf.mxu0
    %v582 = vadd.f32 %v560, %v581
    %583 = vdwg.mxu0
    %584 = vmatpush.msra.mxu0 %v492
    %585 = vmatpush.msra.mxu0 %v490
    %586 = vmatpush.msra.mxu0 %v488
    %587 = vmatpush.msra.mxu0 %v486
    %588 = vmatpush.msra.mxu0 %v484
    %589 = vmatpush.msra.mxu0 %v482
    %590 = vmatpush.msra.mxu0 %v480
    %591 = vmatpush.msra.mxu0 %v478
    %592 = vmatpush.msra.mxu0 %v476
    %593 = vmatpush.msra.mxu0 %v474
    %594 = vmatpush.msra.mxu0 %v472
    %595 = vmatpush.msra.mxu0 %v470
    %596 = vmatpush.msra.mxu0 %v468
    %597 = vmatpush.msra.mxu0 %v466
    %598 = vmatpush.msra.mxu0 %v464
    %599 = vmatpush.msra.mxu0 %v462
    %600 = vmatmul.f32.gmra.mxu0 %v427
    %v601 = vpop.f32.mrf.mxu0
    %v602 = vadd.f32 %v582, %v601
    %603 = vdwg.mxu0
    %604 = vmatpush.msra.mxu0 %v524
    %605 = vmatpush.msra.mxu0 %v522
    %606 = vmatpush.msra.mxu0 %v520
    %607 = vmatpush.msra.mxu0 %v518
    %608 = vmatpush.msra.mxu0 %v516
    %609 = vmatpush.msra.mxu0 %v514
    %610 = vmatpush.msra.mxu0 %v512
    %611 = vmatpush.msra.mxu0 %v510
    %612 = vmatpush.msra.mxu0 %v508
    %613 = vmatpush.msra.mxu0 %v506
    %614 = vmatpush.msra.mxu0 %v504
    %615 = vmatpush.msra.mxu0 %v502
    %616 = vmatpush.msra.mxu0 %v500
    %617 = vmatpush.msra.mxu0 %v498
    %618 = vmatpush.msra.mxu0 %v496
    %619 = vmatpush.msra.mxu0 %v494
    %620 = vmatmul.f32.gmra.mxu0 %v428
    %v621 = vpop.f32.mrf.mxu0
    %v622 = vadd.f32 %v602, %v621
    %623 = vdwg.mxu0
    %624 = vmatpush.msra.mxu0 %v556
    %625 = vmatpush.msra.mxu0 %v554
    %626 = vmatpush.msra.mxu0 %v552
    %627 = vmatpush.msra.mxu0 %v550
    %628 = vmatpush.msra.mxu0 %v548
    %629 = vmatpush.msra.mxu0 %v546
    %630 = vmatpush.msra.mxu0 %v544
    %631 = vmatpush.msra.mxu0 %v542
    %632 = vmatpush.msra.mxu0 %v540
    %633 = vmatpush.msra.mxu0 %v538
    %634 = vmatpush.msra.mxu0 %v536
    %635 = vmatpush.msra.mxu0 %v534
    %636 = vmatpush.msra.mxu0 %v532
    %637 = vmatpush.msra.mxu0 %v530
    %638 = vmatpush.msra.mxu0 %v528
    %639 = vmatpush.msra.mxu0 %v526
    %640 = vmatmul.f32.gmra.mxu0 %v429
    %v641 = vpop.f32.mrf.mxu0
    %v642 = vadd.f32 %v622, %v641
    %643 = vdwg.mxu0
    %644 = vmatpush.msra.mxu0 %v461
    %645 = vmatpush.msra.mxu0 %v459
    %646 = vmatpush.msra.mxu0 %v457
    %647 = vmatpush.msra.mxu0 %v455
    %648 = vmatpush.msra.mxu0 %v453
    %649 = vmatpush.msra.mxu0 %v451
    %650 = vmatpush.msra.mxu0 %v449
    %651 = vmatpush.msra.mxu0 %v447
    %652 = vmatpush.msra.mxu0 %v445
    %653 = vmatpush.msra.mxu0 %v443
    %654 = vmatpush.msra.mxu0 %v441
    %655 = vmatpush.msra.mxu0 %v439
    %656 = vmatpush.msra.mxu0 %v437
    %657 = vmatpush.msra.mxu0 %v435
    %658 = vmatpush.msra.mxu0 %v433
    %659 = vmatpush.msra.mxu0 %v431
    %660 = vmatmul.f32.gmra.mxu0 %v426
    %v661 = vpop.f32.mrf.mxu0
    %v662 = vadd.f32 %v561, %v661
    %663 = vdwg.mxu0
    %664 = vmatpush.msra.mxu0 %v493
    %665 = vmatpush.msra.mxu0 %v491
    %666 = vmatpush.msra.mxu0 %v489
    %667 = vmatpush.msra.mxu0 %v487
    %668 = vmatpush.msra.mxu0 %v485
    %669 = vmatpush.msra.mxu0 %v483
    %670 = vmatpush.msra.mxu0 %v481
    %671 = vmatpush.msra.mxu0 %v479
    %672 = vmatpush.msra.mxu0 %v477
    %673 = vmatpush.msra.mxu0 %v475
    %674 = vmatpush.msra.mxu0 %v473
    %675 = vmatpush.msra.mxu0 %v471
    %676 = vmatpush.msra.mxu0 %v469
    %677 = vmatpush.msra.mxu0 %v467
    %678 = vmatpush.msra.mxu0 %v465
    %679 = vmatpush.msra.mxu0 %v463
    %680 = vmatmul.f32.gmra.mxu0 %v427
    %v681 = vpop.f32.mrf.mxu0
    %v682 = vadd.f32 %v662, %v681
    %683 = vdwg.mxu0
    %684 = vmatpush.msra.mxu0 %v525
    %685 = vmatpush.msra.mxu0 %v523
    %686 = vmatpush.msra.mxu0 %v521
    %687 = vmatpush.msra.mxu0 %v519
    %688 = vmatpush.msra.mxu0 %v517
    %689 = vmatpush.msra.mxu0 %v515
    %690 = vmatpush.msra.mxu0 %v513
    %691 = vmatpush.msra.mxu0 %v511
    %692 = vmatpush.msra.mxu0 %v509
    %693 = vmatpush.msra.mxu0 %v507
    %694 = vmatpush.msra.mxu0 %v505
    %695 = vmatpush.msra.mxu0 %v503
    %696 = vmatpush.msra.mxu0 %v501
    %697 = vmatpush.msra.mxu0 %v499
    %698 = vmatpush.msra.mxu0 %v497
    %699 = vmatpush.msra.mxu0 %v495
    %700 = vmatmul.f32.gmra.mxu0 %v428
    %v701 = vpop.f32.mrf.mxu0
    %v702 = vadd.f32 %v682, %v701
    %703 = vdwg.mxu0
    %704 = vmatpush.msra.mxu0 %v557
    %705 = vmatpush.msra.mxu0 %v555
    %706 = vmatpush.msra.mxu0 %v553
    %707 = vmatpush.msra.mxu0 %v551
    %708 = vmatpush.msra.mxu0 %v549
    %709 = vmatpush.msra.mxu0 %v547
    %710 = vmatpush.msra.mxu0 %v545
    %711 = vmatpush.msra.mxu0 %v543
    %712 = vmatpush.msra.mxu0 %v541
    %713 = vmatpush.msra.mxu0 %v539
    %714 = vmatpush.msra.mxu0 %v537
    %715 = vmatpush.msra.mxu0 %v535
    %716 = vmatpush.msra.mxu0 %v533
    %717 = vmatpush.msra.mxu0 %v531
    %718 = vmatpush.msra.mxu0 %v529
    %719 = vmatpush.msra.mxu0 %v527
    %720 = vmatmul.f32.gmra.mxu0 %v429
    %v721 = vpop.f32.mrf.mxu0
    %v722 = vadd.f32 %v702, %v721
    %723 = vdwg.mxu0
    %s724 = scalar_lea.vmem %s3, 1
    %v725 = vld [vmem:[%s724] ss:$4 sm:$0x3]
    %v727 = vperm.slane %v725, 0
    %v728 = vperm.slane %v725, 1
    %v731 = vmul.f32 %v642, %v727
    %v732 = vmul.f32 %v722, %v728
    %v733 = vadd.f32 %v731, %v732
    %734 = vadd.xlane.f32.xlu0 %v733
    %v735 = vpop.xlane.xlu0 %734
    %v736 = vld [vmem:[%s3 + $0x2] sm:$0x1]
    %v737 = vperm.slane %v736, 0
    %v738 = vadd.f32 %v735, %v737
    %v739 = vxor.u32 %v738, 2147483648
    %v740 = vmul.f32 %v739, 1.442695
    %v741 = vpow.pop %v740
    %v742 = vadd.f32 %v741, 1.0
    %v743 = vrcp.pop %v742
    %v744 = vmul.f32 %v742, %v743
    %v745 = vsub.f32 1.0, %v744
    %v746 = vmul.f32 %v743, %v745
    %v747 = vadd.f32 %v743, %v746
    %vm748 = vweird.f32 %v742
    %vm749 = vweird.f32 %v743
    %vm750 = vmor %vm748, %vm749
    %v751 = vsel %vm750, %v743, %v747
    %v752 = vand.u32 2147483647, %v742
    %vm753 = vcmp.eq.f32.partialorder %v752, 8.507059e+37
    %v754 = vand.u32 %v742, 2147483648
    %v755 = vor.u32 1.1754944e-38, %v754
    %v756 = vsel %vm753, %v755, %v751
    %v757 = vmul.f32 1.0, %v756
    %v758 = vmul.f32 %v757, 9.0
    %v759 = vadd.f32 %v758, 1.0
    %vm760 = vcmask 7168
    %761 = vst.msk [vmem:[%s4] sm:$0xff] %vm760, %v759
    // Predicated region
    $region22: #{regression_forward.1} parent=1 // pred_check
      _
    $region23: #{regression_forward.1} parent=1 // pred_check_branch
      %763 = sbr.rel (0) target = $region25
    $region24: #{regression_forward.1} parent=1 // pred_region
      _
    $region25: #{regression_forward.1} parent=1 // pred_fallthru
      _
    // Predicated region
    $region26: #{regression_forward.1} parent=1 // pred_check
      _
    $region27: #{regression_forward.1} parent=1 // pred_check_branch
      %765 = sbr.rel (0) target = $region29
    $region28: #{regression_forward.1} parent=1 // pred_region
      _
    $region29: #{regression_forward.1} parent=1 // pred_fallthru
      _
    %766 = vsyncpa [#allocation4], 1

</llo_original>
